<compile_context>
chip_gen: v7x
topology: tpu7x:2x2x1
jax: 0.10.0
libtpu: 0.0.40
codegen_flags: <defaults>
</compile_context>

<pallas_src>
import functools

import jax
import jax.numpy as jnp
from jax.experimental import pallas as pl
from jax.experimental.pallas import tpu as pltpu


# ----------------------------------------------------------------------------
# Pallas kernel: the full multi-layer LSTM encoder.
# ----------------------------------------------------------------------------
def _encoder_kernel(*refs, num_layers, T, Bp):
    if num_layers > 1:
        (x_ref, wih0_ref, b0_ref, whh_ref, wihr_ref, br_ref,
         hn_ref, cn_ref, zx_scr, y_scr) = refs
    else:
        (x_ref, wih0_ref, b0_ref, whh_ref,
         hn_ref, cn_ref, zx_scr, y_scr) = refs
        wihr_ref = br_ref = None

    H = y_scr.shape[-1]

    # ---- layer 0 input projection, hoisted off the recurrence: one (T*Bp, F) GEMM ----
    zx_scr[...] = (jnp.dot(x_ref[...], wih0_ref[...],
                           preferred_element_type=jnp.float32)
                   + b0_ref[...])

    for l in range(num_layers):
        if l > 0:
            # Input projection for layer l from the previous layer's full hidden sequence
            # (still resident in VMEM): one (T*Bp, H) x (H, 4H) GEMM.
            zx_scr[...] = (jnp.dot(y_scr[...], wihr_ref[l - 1],
                                   preferred_element_type=jnp.float32)
                           + br_ref[l - 1])

        whh_l = whh_ref[l]                      # (H, 4H), lives in vregs across the loop
        store_seq = l < num_layers - 1          # last layer's sequence is never consumed

        def step(t, carry, whh_l=whh_l, store_seq=store_seq):
            h, c = carry
            row = pl.multiple_of(t * Bp, Bp)
            # Only the recurrent matmul is on the serial critical path.
            z = zx_scr[pl.ds(row, Bp), :] + jnp.dot(
                h, whh_l, preferred_element_type=jnp.float32)
            i_g = jax.nn.sigmoid(z[:, 0 * H:1 * H])
            f_g = jax.nn.sigmoid(z[:, 1 * H:2 * H])
            g_g = jnp.tanh(z[:, 2 * H:3 * H])
            o_g = jax.nn.sigmoid(z[:, 3 * H:4 * H])
            c_new = f_g * c + i_g * g_g
            h_new = o_g * jnp.tanh(c_new)
            if store_seq:
                y_scr[pl.ds(row, Bp), :] = h_new
            return (h_new, c_new)

        zeros = jnp.zeros((Bp, H), jnp.float32)
        h_T, c_T = jax.lax.fori_loop(0, T, step, (zeros, zeros))

        # Final states written exactly once per layer.
        hn_ref[l] = h_T
        cn_ref[l] = c_T


# ----------------------------------------------------------------------------
# Wrapper: batch padding, time-major flattening, single pallas_call.
# ----------------------------------------------------------------------------
@jax.jit
def lstm_encoder_forward(x, params):
    """x: (batch, seq, input_size) f32.  Returns (last_out (B,1,H), (h_n, c_n))."""
    B, T, F_in = x.shape
    H = params[0][1].shape[0]
    L = len(params)
    Bp = ((B + 7) // 8) * 8                     # pad batch to f32 sublane multiple

    x_tm = jnp.swapaxes(x, 0, 1)                # (T, B, F) time-major
    if Bp != B:
        x_tm = jnp.pad(x_tm, ((0, 0), (0, Bp - B), (0, 0)))
    x_flat = x_tm.reshape(T * Bp, F_in)         # (T*Bp, F): lane-dense GEMM LHS

    wih0_t, _, b0 = params[0]
    whh_all = jnp.stack([p[1] for p in params], axis=0)          # (L, H, 4H)

    inputs = [x_flat, wih0_t, b0, whh_all]
    in_specs = [
        pl.BlockSpec((T * Bp, F_in), lambda i: (0, 0)),
        pl.BlockSpec((F_in, 4 * H), lambda i: (0, 0)),
        pl.BlockSpec((1, 4 * H), lambda i: (0, 0)),
        pl.BlockSpec((L, H, 4 * H), lambda i: (0, 0, 0)),
    ]
    if L > 1:
        wih_rest = jnp.stack([p[0] for p in params[1:]], axis=0)  # (L-1, H, 4H)
        b_rest = jnp.stack([p[2] for p in params[1:]], axis=0)    # (L-1, 1, 4H)
        inputs += [wih_rest, b_rest]
        in_specs += [
            pl.BlockSpec((L - 1, H, 4 * H), lambda i: (0, 0, 0)),
            pl.BlockSpec((L - 1, 1, 4 * H), lambda i: (0, 0, 0)),
        ]

    kernel = functools.partial(_encoder_kernel, num_layers=L, T=T, Bp=Bp)

    hn, cn = pl.pallas_call(
        kernel,
        out_shape=(
            jax.ShapeDtypeStruct((L, Bp, H), jnp.float32),
            jax.ShapeDtypeStruct((L, Bp, H), jnp.float32),
        ),
        grid_spec=pltpu.PrefetchScalarGridSpec(
            num_scalar_prefetch=0,
            grid=(1,),
            in_specs=in_specs,
            out_specs=[
                pl.BlockSpec((L, Bp, H), lambda i: (0, 0, 0)),
                pl.BlockSpec((L, Bp, H), lambda i: (0, 0, 0)),
            ],
            scratch_shapes=[
                pltpu.VMEM((T * Bp, 4 * H), jnp.float32),   # hoisted input projection Zx
                pltpu.VMEM((T * Bp, H), jnp.float32),       # per-layer hidden sequence
            ],
        ),
        compiler_params=pltpu.CompilerParams(
            dimension_semantics=("arbitrary",)),
    )(*inputs)

    h_n = hn[:, :B, :]                          # drop batch padding
    c_n = cn[:, :B, :]
    last = h_n[-1][:, None, :]                  # encoded_output[:, [-1], :] == h_n of top layer
    return last, (h_n, c_n)


# ----------------------------------------------------------------------------
# Pure-JAX reference (PyTorch LSTM semantics) for validation
# ----------------------------------------------------------------------------
def lstm_encoder_ref(x, params):
    B = x.shape[0]
    seq_in = x
    h_ns, c_ns = [], []
    for (wih_t, whh_t, bias) in params:
        H = whh_t.shape[0]

        def step(carry, xt):
            h, c = carry
            z = xt @ wih_t + h @ whh_t + bias
            i = jax.nn.sigmoid(z[:, :H])
            f = jax.nn.sigmoid(z[:, H:2 * H])
            g = jnp.tanh(z[:, 2 * H:3 * H])
            o = jax.nn.sigmoid(z[:, 3 * H:])
            c = f * c + i * g
            h = o * jnp.tanh(c)
            return (h, c), h

        init = (jnp.zeros((B, H), jnp.float32), jnp.zeros((B, H), jnp.float32))
        (h_T, c_T), ys = jax.lax.scan(step, init, jnp.swapaxes(seq_in, 0, 1))
        seq_in = jnp.swapaxes(ys, 0, 1)
        h_ns.append(h_T)
        c_ns.append(c_T)
    return seq_in[:, -1:, :], (jnp.stack(h_ns), jnp.stack(c_ns))


# ----------------------------------------------------------------------------
# Deterministic parameter init (nn.LSTM shapes, stored pre-transposed / pre-summed)
# ----------------------------------------------------------------------------
def init_lstm_params(key, input_size, hidden_size, num_layers):
    params = []
    bound = 1.0 / jnp.sqrt(hidden_size)
    for layer in range(num_layers):
        in_f = input_size if layer == 0 else hidden_size
        key, k1, k2, k3, k4 = jax.random.split(key, 5)
        w_ih = jax.random.uniform(k1, (4 * hidden_size, in_f), jnp.float32, -bound, bound)
        w_hh = jax.random.uniform(k2, (4 * hidden_size, hidden_size), jnp.float32, -bound, bound)
        b_ih = jax.random.uniform(k3, (4 * hidden_size,), jnp.float32, -bound, bound)
        b_hh = jax.random.uniform(k4, (4 * hidden_size,), jnp.float32, -bound, bound)
        params.append((w_ih.T, w_hh.T, (b_ih + b_hh)[None, :]))
    return params


if __name__ == "__main__":
    batch, seq, input_size, hidden_size, num_layers = 2, 8, 16, 32, 2

    key = jax.random.PRNGKey(0)
    key, kx = jax.random.split(key)
    x = jax.random.normal(kx, (batch, seq, input_size), jnp.float32)
    params = init_lstm_params(key, input_size, hidden_size, num_layers)

    last, (h_n, c_n) = lstm_encoder_forward(x, params)
    jax.block_until_ready((last, h_n, c_n))

    last_ref, (h_ref, c_ref) = lstm_encoder_ref(x, params)
    assert last.shape == (batch, 1, hidden_size)
    assert h_n.shape == (num_layers, batch, hidden_size)
    assert c_n.shape == (num_layers, batch, hidden_size)
    assert jnp.allclose(last, last_ref, atol=1e-5, rtol=1e-5)
    assert jnp.allclose(h_n, h_ref, atol=1e-5, rtol=1e-5)
    assert jnp.allclose(c_n, c_ref, atol=1e-5, rtol=1e-5)

    print("KERNEL_OK")
</pallas_src>

<mosaic_0001>
module attributes {stable_mosaic.version = 11 : i64} {
  func.func @_encoder_kernel(%arg0: i32, %arg1: memref<64x16xf32, #tpu.memory_space<vmem>>, %arg2: memref<16x128xf32, #tpu.memory_space<vmem>>, %arg3: memref<1x128xf32, #tpu.memory_space<vmem>>, %arg4: memref<2x32x128xf32, #tpu.memory_space<vmem>>, %arg5: memref<1x32x128xf32, #tpu.memory_space<vmem>>, %arg6: memref<1x1x128xf32, #tpu.memory_space<vmem>>, %arg7: memref<2x8x32xf32, #tpu.memory_space<vmem>>, %arg8: memref<2x8x32xf32, #tpu.memory_space<vmem>>, %arg9: memref<64x128xf32, #tpu.memory_space<vmem>>, %arg10: memref<64x32xf32, #tpu.memory_space<vmem>>) attributes {dimension_semantics = [#tpu.dimension_semantics<arbitrary>], iteration_bounds = array<i64: 1>, scalar_prefetch = 0 : i64, scratch_operands = 2 : i64, tpu.core_type = #tpu.core_type<tc>, window_params = [{pipeline_mode = #tpu.pipeline_mode<synchronous>, transform_indices = @transform_0, window_bounds = array<i64: 64, 16>}, {pipeline_mode = #tpu.pipeline_mode<synchronous>, transform_indices = @transform_1, window_bounds = array<i64: 16, 128>}, {pipeline_mode = #tpu.pipeline_mode<synchronous>, transform_indices = @transform_2, window_bounds = array<i64: 1, 128>}, {pipeline_mode = #tpu.pipeline_mode<synchronous>, transform_indices = @transform_3, window_bounds = array<i64: 2, 32, 128>}, {pipeline_mode = #tpu.pipeline_mode<synchronous>, transform_indices = @transform_4, window_bounds = array<i64: 1, 32, 128>}, {pipeline_mode = #tpu.pipeline_mode<synchronous>, transform_indices = @transform_5, window_bounds = array<i64: 1, 1, 128>}, {pipeline_mode = #tpu.pipeline_mode<synchronous>, transform_indices = @transform_6, window_bounds = array<i64: 2, 8, 32>}, {pipeline_mode = #tpu.pipeline_mode<synchronous>, transform_indices = @transform_7, window_bounds = array<i64: 2, 8, 32>}]} {
    %c0 = arith.constant 0 : index
    %c0_0 = arith.constant 0 : index
    %0 = vector.load %arg1[%c0, %c0_0] : memref<64x16xf32, #tpu.memory_space<vmem>>, vector<64x16xf32>
    %c0_1 = arith.constant 0 : index
    %c0_2 = arith.constant 0 : index
    %1 = vector.load %arg2[%c0_1, %c0_2] : memref<16x128xf32, #tpu.memory_space<vmem>>, vector<16x128xf32>
    %cst = arith.constant dense<0.000000e+00> : vector<64x128xf32>
    %2 = tpu.matmul %0, %1, %cst {dimension_numbers = #tpu.dot_dimension_numbers<[1], [0], [0], [1], [0, 0, 1, 1], [], []>} : vector<64x16xf32>, vector<16x128xf32>, vector<64x128xf32> -> vector<64x128xf32>
    %c0_3 = arith.constant 0 : index
    %c0_4 = arith.constant 0 : index
    %3 = vector.load %arg3[%c0_3, %c0_4] : memref<1x128xf32, #tpu.memory_space<vmem>>, vector<1x128xf32>
    %4 = vector.broadcast %3 : vector<1x128xf32> to vector<64x128xf32>
    %5 = arith.addf %2, %4 : vector<64x128xf32>
    %c0_5 = arith.constant 0 : index
    %c0_6 = arith.constant 0 : index
    %6 = vector.load %arg9[%c0_5, %c0_6] : memref<64x128xf32, #tpu.memory_space<vmem>>, vector<64x128xf32>
    tpu.vector_store %arg9[%c0_5, %c0_6], %5 {strides = array<i32>} : memref<64x128xf32, #tpu.memory_space<vmem>>, vector<64x128xf32>,
    %c0_7 = arith.constant 0 : index
    %c0_8 = arith.constant 0 : index
    %c0_9 = arith.constant 0 : index
    %7 = vector.load %arg4[%c0_7, %c0_8, %c0_9] : memref<2x32x128xf32, #tpu.memory_space<vmem>>, vector<1x32x128xf32>
    %8 = vector.shape_cast %7 : vector<1x32x128xf32> to vector<32x128xf32>
    %cst_10 = arith.constant 0.000000e+00 : f32
    %9 = vector.broadcast %cst_10 : f32 to vector<8x32xf32>
    %c0_i32 = arith.constant 0 : i32
    %c8_i32 = arith.constant 8 : i32
    %10 = arith.addi %c0_i32, %c8_i32 : i32
    %c1_i32 = arith.constant 1 : i32
    %11:2 = scf.for %arg11 = %c0_i32 to %10 step %c1_i32 iter_args(%arg12 = %9, %arg13 = %9) -> (vector<8x32xf32>, vector<8x32xf32>)  : i32 {
      %c8_i32_42 = arith.constant 8 : i32
      %38 = arith.muli %arg11, %c8_i32_42 : i32
      %39 = tpu.assume_multiple %38, 8 : i32
      %40 = arith.index_cast %39 : i32 to index
      %c0_43 = arith.constant 0 : index
      %41 = vector.load %arg9[%40, %c0_43] : memref<64x128xf32, #tpu.memory_space<vmem>>, vector<8x128xf32>
      %cst_44 = arith.constant dense<0.000000e+00> : vector<8x128xf32>
      %42 = tpu.matmul %arg12, %8, %cst_44 {dimension_numbers = #tpu.dot_dimension_numbers<[1], [0], [0], [1], [0, 0, 1, 1], [], []>} : vector<8x32xf32>, vector<32x128xf32>, vector<8x128xf32> -> vector<8x128xf32>
      %43 = arith.addf %41, %42 : vector<8x128xf32>
      %44 = vector.extract_strided_slice %43 {offsets = [0, 0], sizes = [8, 32], strides = [1, 1]} : vector<8x128xf32> to vector<8x32xf32>
      %45 = arith.negf %44 : vector<8x32xf32>
      %46 = math.exp %45 : vector<8x32xf32>
      %cst_45 = arith.constant 1.000000e+00 : f32
      %47 = vector.broadcast %cst_45 : f32 to vector<8x32xf32>
      %48 = arith.addf %47, %46 : vector<8x32xf32>
      %49 = arith.divf %47, %48 : vector<8x32xf32>
      %50 = vector.extract_strided_slice %43 {offsets = [0, 32], sizes = [8, 32], strides = [1, 1]} : vector<8x128xf32> to vector<8x32xf32>
      %51 = arith.negf %50 : vector<8x32xf32>
      %52 = math.exp %51 : vector<8x32xf32>
      %cst_46 = arith.constant 1.000000e+00 : f32
      %53 = vector.broadcast %cst_46 : f32 to vector<8x32xf32>
      %54 = arith.addf %53, %52 : vector<8x32xf32>
      %55 = arith.divf %53, %54 : vector<8x32xf32>
      %56 = vector.extract_strided_slice %43 {offsets = [0, 64], sizes = [8, 32], strides = [1, 1]} : vector<8x128xf32> to vector<8x32xf32>
      %57 = math.tanh %56 : vector<8x32xf32>
      %58 = vector.extract_strided_slice %43 {offsets = [0, 96], sizes = [8, 32], strides = [1, 1]} : vector<8x128xf32> to vector<8x32xf32>
      %59 = arith.negf %58 : vector<8x32xf32>
      %60 = math.exp %59 : vector<8x32xf32>
      %cst_47 = arith.constant 1.000000e+00 : f32
      %61 = vector.broadcast %cst_47 : f32 to vector<8x32xf32>
      %62 = arith.addf %61, %60 : vector<8x32xf32>
      %63 = arith.divf %61, %62 : vector<8x32xf32>
      %64 = arith.mulf %55, %arg13 : vector<8x32xf32>
      %65 = arith.mulf %49, %57 : vector<8x32xf32>
      %66 = arith.addf %64, %65 : vector<8x32xf32>
      %67 = math.tanh %66 : vector<8x32xf32>
      %68 = arith.mulf %63, %67 : vector<8x32xf32>
      %69 = arith.index_cast %39 : i32 to index
      %c0_48 = arith.constant 0 : index
      %70 = vector.load %arg10[%69, %c0_48] : memref<64x32xf32, #tpu.memory_space<vmem>>, vector<8x32xf32>
      tpu.vector_store %arg10[%69, %c0_48], %68 {strides = array<i32>} : memref<64x32xf32, #tpu.memory_space<vmem>>, vector<8x32xf32>,
      scf.yield %68, %66 : vector<8x32xf32>, vector<8x32xf32>
    }
    %c8_i32_11 = arith.constant 8 : i32
    %c0_12 = arith.constant 0 : index
    %c0_13 = arith.constant 0 : index
    %c0_14 = arith.constant 0 : index
    %12 = vector.load %arg7[%c0_12, %c0_13, %c0_14] : memref<2x8x32xf32, #tpu.memory_space<vmem>>, vector<1x8x32xf32>
    %13 = vector.shape_cast %12 : vector<1x8x32xf32> to vector<8x32xf32>
    %14 = vector.shape_cast %11#0 : vector<8x32xf32> to vector<1x8x32xf32>
    tpu.vector_store %arg7[%c0_12, %c0_13, %c0_14], %14 {strides = array<i32>} : memref<2x8x32xf32, #tpu.memory_space<vmem>>, vector<1x8x32xf32>,
    %c0_15 = arith.constant 0 : index
    %c0_16 = arith.constant 0 : index
    %c0_17 = arith.constant 0 : index
    %15 = vector.load %arg8[%c0_15, %c0_16, %c0_17] : memref<2x8x32xf32, #tpu.memory_space<vmem>>, vector<1x8x32xf32>
    %16 = vector.shape_cast %15 : vector<1x8x32xf32> to vector<8x32xf32>
    %17 = vector.shape_cast %11#1 : vector<8x32xf32> to vector<1x8x32xf32>
    tpu.vector_store %arg8[%c0_15, %c0_16, %c0_17], %17 {strides = array<i32>} : memref<2x8x32xf32, #tpu.memory_space<vmem>>, vector<1x8x32xf32>,
    %c0_18 = arith.constant 0 : index
    %c0_19 = arith.constant 0 : index
    %18 = vector.load %arg10[%c0_18, %c0_19] : memref<64x32xf32, #tpu.memory_space<vmem>>, vector<64x32xf32>
    %c0_20 = arith.constant 0 : index
    %c0_21 = arith.constant 0 : index
    %c0_22 = arith.constant 0 : index
    %19 = vector.load %arg5[%c0_20, %c0_21, %c0_22] : memref<1x32x128xf32, #tpu.memory_space<vmem>>, vector<1x32x128xf32>
    %20 = vector.shape_cast %19 : vector<1x32x128xf32> to vector<32x128xf32>
    %cst_23 = arith.constant dense<0.000000e+00> : vector<64x128xf32>
    %21 = tpu.matmul %18, %20, %cst_23 {dimension_numbers = #tpu.dot_dimension_numbers<[1], [0], [0], [1], [0, 0, 1, 1], [], []>} : vector<64x32xf32>, vector<32x128xf32>, vector<64x128xf32> -> vector<64x128xf32>
    %c0_24 = arith.constant 0 : index
    %c0_25 = arith.constant 0 : index
    %c0_26 = arith.constant 0 : index
    %22 = vector.load %arg6[%c0_24, %c0_25, %c0_26] : memref<1x1x128xf32, #tpu.memory_space<vmem>>, vector<1x1x128xf32>
    %23 = vector.shape_cast %22 : vector<1x1x128xf32> to vector<1x128xf32>
    %24 = vector.broadcast %23 : vector<1x128xf32> to vector<64x128xf32>
    %25 = arith.addf %21, %24 : vector<64x128xf32>
    %c0_27 = arith.constant 0 : index
    %c0_28 = arith.constant 0 : index
    %26 = vector.load %arg9[%c0_27, %c0_28] : memref<64x128xf32, #tpu.memory_space<vmem>>, vector<64x128xf32>
    tpu.vector_store %arg9[%c0_27, %c0_28], %25 {strides = array<i32>} : memref<64x128xf32, #tpu.memory_space<vmem>>, vector<64x128xf32>,
    %c1 = arith.constant 1 : index
    %c0_29 = arith.constant 0 : index
    %c0_30 = arith.constant 0 : index
    %27 = vector.load %arg4[%c1, %c0_29, %c0_30] : memref<2x32x128xf32, #tpu.memory_space<vmem>>, vector<1x32x128xf32>
    %28 = vector.shape_cast %27 : vector<1x32x128xf32> to vector<32x128xf32>
    %cst_31 = arith.constant 0.000000e+00 : f32
    %29 = vector.broadcast %cst_31 : f32 to vector<8x32xf32>
    %c0_i32_32 = arith.constant 0 : i32
    %c8_i32_33 = arith.constant 8 : i32
    %30 = arith.addi %c0_i32_32, %c8_i32_33 : i32
    %c1_i32_34 = arith.constant 1 : i32
    %31:2 = scf.for %arg11 = %c0_i32_32 to %30 step %c1_i32_34 iter_args(%arg12 = %29, %arg13 = %29) -> (vector<8x32xf32>, vector<8x32xf32>)  : i32 {
      %c8_i32_42 = arith.constant 8 : i32
      %38 = arith.muli %arg11, %c8_i32_42 : i32
      %39 = tpu.assume_multiple %38, 8 : i32
      %40 = arith.index_cast %39 : i32 to index
      %c0_43 = arith.constant 0 : index
      %41 = vector.load %arg9[%40, %c0_43] : memref<64x128xf32, #tpu.memory_space<vmem>>, vector<8x128xf32>
      %cst_44 = arith.constant dense<0.000000e+00> : vector<8x128xf32>
      %42 = tpu.matmul %arg12, %28, %cst_44 {dimension_numbers = #tpu.dot_dimension_numbers<[1], [0], [0], [1], [0, 0, 1, 1], [], []>} : vector<8x32xf32>, vector<32x128xf32>, vector<8x128xf32> -> vector<8x128xf32>
      %43 = arith.addf %41, %42 : vector<8x128xf32>
      %44 = vector.extract_strided_slice %43 {offsets = [0, 0], sizes = [8, 32], strides = [1, 1]} : vector<8x128xf32> to vector<8x32xf32>
      %45 = arith.negf %44 : vector<8x32xf32>
      %46 = math.exp %45 : vector<8x32xf32>
      %cst_45 = arith.constant 1.000000e+00 : f32
      %47 = vector.broadcast %cst_45 : f32 to vector<8x32xf32>
      %48 = arith.addf %47, %46 : vector<8x32xf32>
      %49 = arith.divf %47, %48 : vector<8x32xf32>
      %50 = vector.extract_strided_slice %43 {offsets = [0, 32], sizes = [8, 32], strides = [1, 1]} : vector<8x128xf32> to vector<8x32xf32>
      %51 = arith.negf %50 : vector<8x32xf32>
      %52 = math.exp %51 : vector<8x32xf32>
      %cst_46 = arith.constant 1.000000e+00 : f32
      %53 = vector.broadcast %cst_46 : f32 to vector<8x32xf32>
      %54 = arith.addf %53, %52 : vector<8x32xf32>
      %55 = arith.divf %53, %54 : vector<8x32xf32>
      %56 = vector.extract_strided_slice %43 {offsets = [0, 64], sizes = [8, 32], strides = [1, 1]} : vector<8x128xf32> to vector<8x32xf32>
      %57 = math.tanh %56 : vector<8x32xf32>
      %58 = vector.extract_strided_slice %43 {offsets = [0, 96], sizes = [8, 32], strides = [1, 1]} : vector<8x128xf32> to vector<8x32xf32>
      %59 = arith.negf %58 : vector<8x32xf32>
      %60 = math.exp %59 : vector<8x32xf32>
      %cst_47 = arith.constant 1.000000e+00 : f32
      %61 = vector.broadcast %cst_47 : f32 to vector<8x32xf32>
      %62 = arith.addf %61, %60 : vector<8x32xf32>
      %63 = arith.divf %61, %62 : vector<8x32xf32>
      %64 = arith.mulf %55, %arg13 : vector<8x32xf32>
      %65 = arith.mulf %49, %57 : vector<8x32xf32>
      %66 = arith.addf %64, %65 : vector<8x32xf32>
      %67 = math.tanh %66 : vector<8x32xf32>
      %68 = arith.mulf %63, %67 : vector<8x32xf32>
      scf.yield %68, %66 : vector<8x32xf32>, vector<8x32xf32>
    }
    %c8_i32_35 = arith.constant 8 : i32
    %c1_36 = arith.constant 1 : index
    %c0_37 = arith.constant 0 : index
    %c0_38 = arith.constant 0 : index
    %32 = vector.load %arg7[%c1_36, %c0_37, %c0_38] : memref<2x8x32xf32, #tpu.memory_space<vmem>>, vector<1x8x32xf32>
    %33 = vector.shape_cast %32 : vector<1x8x32xf32> to vector<8x32xf32>
    %34 = vector.shape_cast %31#0 : vector<8x32xf32> to vector<1x8x32xf32>
    tpu.vector_store %arg7[%c1_36, %c0_37, %c0_38], %34 {strides = array<i32>} : memref<2x8x32xf32, #tpu.memory_space<vmem>>, vector<1x8x32xf32>,
    %c1_39 = arith.constant 1 : index
    %c0_40 = arith.constant 0 : index
    %c0_41 = arith.constant 0 : index
    %35 = vector.load %arg8[%c1_39, %c0_40, %c0_41] : memref<2x8x32xf32, #tpu.memory_space<vmem>>, vector<1x8x32xf32>
    %36 = vector.shape_cast %35 : vector<1x8x32xf32> to vector<8x32xf32>
    %37 = vector.shape_cast %31#1 : vector<8x32xf32> to vector<1x8x32xf32>
    tpu.vector_store %arg8[%c1_39, %c0_40, %c0_41], %37 {strides = array<i32>} : memref<2x8x32xf32, #tpu.memory_space<vmem>>, vector<1x8x32xf32>,
    return
  }
  func.func @transform_0(%arg0: i32) -> (i32, i32) {
    %c0_i32 = arith.constant 0 : i32
    %c0_i32_0 = arith.constant 0 : i32
    %c0_i32_1 = arith.constant 0 : i32
    return %c0_i32, %c0_i32_0 : i32, i32
  }
  func.func @transform_1(%arg0: i32) -> (i32, i32) {
    %c0_i32 = arith.constant 0 : i32
    %c0_i32_0 = arith.constant 0 : i32
    %c0_i32_1 = arith.constant 0 : i32
    return %c0_i32, %c0_i32_0 : i32, i32
  }
  func.func @transform_2(%arg0: i32) -> (i32, i32) {
    %c0_i32 = arith.constant 0 : i32
    %c0_i32_0 = arith.constant 0 : i32
    %c0_i32_1 = arith.constant 0 : i32
    return %c0_i32, %c0_i32_0 : i32, i32
  }
  func.func @transform_3(%arg0: i32) -> (i32, i32, i32) {
    %c0_i32 = arith.constant 0 : i32
    %c0_i32_0 = arith.constant 0 : i32
    %c0_i32_1 = arith.constant 0 : i32
    %c0_i32_2 = arith.constant 0 : i32
    return %c0_i32, %c0_i32_0, %c0_i32_1 : i32, i32, i32
  }
  func.func @transform_4(%arg0: i32) -> (i32, i32, i32) {
    %c0_i32 = arith.constant 0 : i32
    %c0_i32_0 = arith.constant 0 : i32
    %c0_i32_1 = arith.constant 0 : i32
    %c0_i32_2 = arith.constant 0 : i32
    return %c0_i32, %c0_i32_0, %c0_i32_1 : i32, i32, i32
  }
  func.func @transform_5(%arg0: i32) -> (i32, i32, i32) {
    %c0_i32 = arith.constant 0 : i32
    %c0_i32_0 = arith.constant 0 : i32
    %c0_i32_1 = arith.constant 0 : i32
    %c0_i32_2 = arith.constant 0 : i32
    return %c0_i32, %c0_i32_0, %c0_i32_1 : i32, i32, i32
  }
  func.func @transform_6(%arg0: i32) -> (i32, i32, i32) {
    %c0_i32 = arith.constant 0 : i32
    %c0_i32_0 = arith.constant 0 : i32
    %c0_i32_1 = arith.constant 0 : i32
    %c0_i32_2 = arith.constant 0 : i32
    return %c0_i32, %c0_i32_0, %c0_i32_1 : i32, i32, i32
  }
  func.func @transform_7(%arg0: i32) -> (i32, i32, i32) {
    %c0_i32 = arith.constant 0 : i32
    %c0_i32_0 = arith.constant 0 : i32
    %c0_i32_1 = arith.constant 0 : i32
    %c0_i32_2 = arith.constant 0 : i32
    return %c0_i32, %c0_i32_0, %c0_i32_1 : i32, i32, i32
  }
}

</mosaic_0001>

<llo_original>
// kernel: lstm_encoder_forward.1
$region0: #{lstm_encoder_forward.1}
  #allocation0 [shape = 'u32[]', space=smem, size = 0x4, offset = 0x4, fixed_abs, tag = 'smem constant byte address 0x4 - core index']
  #allocation1 [shape = 'u32[144,128]{1,0:T(1,128)}', space=vmem, size = 0x12000, scoped, tag = 'internal scratch']
  #allocation2 [shape = 'f32[64,128]{1,0:T(8,128)}', space=vmem, size = 0x8000, scoped, tag = 'scratch operand']
  #allocation3 [shape = 'f32[64,32]{1,0:T(8,128)}', space=vmem, size = 0x8000, scoped, tag = 'scratch operand']
  %s0 = inlined_call_operand.vmem [shape: f32[64,16], index: 0, kind: input, shape index: {}]
  %s1 = inlined_call_operand.vmem [shape: f32[16,128], index: 1, kind: input, shape index: {}]
  %s2 = inlined_call_operand.vmem [shape: f32[1,128], index: 2, kind: input, shape index: {}]
  %s3 = inlined_call_operand.vmem [shape: f32[2,32,128], index: 3, kind: input, shape index: {}]
  %s4 = inlined_call_operand.vmem [shape: f32[1,32,128], index: 4, kind: input, shape index: {}]
  %s5 = inlined_call_operand.vmem [shape: f32[1,1,128], index: 5, kind: input, shape index: {}]
  %s6 = inlined_call_operand.vmem [shape: f32[2,8,32], index: 6, kind: output, shape index: {0}]
  %s7 = inlined_call_operand.vmem [shape: f32[2,8,32], index: 7, kind: output, shape index: {1}]
  %8 = xla_tuple %s6, %s7
  %s9 = sld [smem:[#allocation0]]
  $region56: #{lstm_encoder_forward.1} parent=0
    _
  %s11 = ssub.s32 1, %s9
  %s12 = scalar_select 0, %s11, %s9
  // Predicated region
  $region2: #{lstm_encoder_forward.1} parent=0 // pred_check
    _
  $region3: #{lstm_encoder_forward.1} parent=0 // pred_check_branch
    %14 = sbr.rel (0) target = $region5
  $region4: #{lstm_encoder_forward.1} parent=0 // pred_region
    _
  $region5: #{lstm_encoder_forward.1} parent=0 // pred_fallthru
    _
  // Predicated region
  $region6: #{lstm_encoder_forward.1} parent=0 // pred_check
    _
  $region7: #{lstm_encoder_forward.1} parent=0 // pred_check_branch
    %16 = sbr.rel (0) target = $region9
  $region8: #{lstm_encoder_forward.1} parent=0 // pred_region
    _
  $region9: #{lstm_encoder_forward.1} parent=0 // pred_fallthru
    _
  // Predicated region
  $region10: #{lstm_encoder_forward.1} parent=0 // pred_check
    _
  $region11: #{lstm_encoder_forward.1} parent=0 // pred_check_branch
    %18 = sbr.rel (0) target = $region13
  $region12: #{lstm_encoder_forward.1} parent=0 // pred_region
    _
  $region13: #{lstm_encoder_forward.1} parent=0 // pred_fallthru
    _
  // Predicated region
  $region14: #{lstm_encoder_forward.1} parent=0 // pred_check
    _
  $region15: #{lstm_encoder_forward.1} parent=0 // pred_check_branch
    %20 = sbr.rel (0) target = $region17
  $region16: #{lstm_encoder_forward.1} parent=0 // pred_region
    _
  $region17: #{lstm_encoder_forward.1} parent=0 // pred_fallthru
    _
  // Predicated region
  $region18: #{lstm_encoder_forward.1} parent=0 // pred_check
    _
  $region19: #{lstm_encoder_forward.1} parent=0 // pred_check_branch
    %22 = sbr.rel (0) target = $region21
  $region20: #{lstm_encoder_forward.1} parent=0 // pred_region
    _
  $region21: #{lstm_encoder_forward.1} parent=0 // pred_fallthru
    _
  // Predicated region
  $region22: #{lstm_encoder_forward.1} parent=0 // pred_check
    _
  $region23: #{lstm_encoder_forward.1} parent=0 // pred_check_branch
    %24 = sbr.rel (0) target = $region25
  $region24: #{lstm_encoder_forward.1} parent=0 // pred_region
    _
  $region25: #{lstm_encoder_forward.1} parent=0 // pred_fallthru
    _
  %v25 = vld [vmem:[%s0] sm:$0xff]
  %v26 = vld [vmem:[%s0 + $0x8] sm:$0xff]
  %v27 = vld [vmem:[%s0 + $0x10] sm:$0xff]
  %v28 = vld [vmem:[%s0 + $0x18] sm:$0xff]
  %v29 = vld [vmem:[%s0 + $0x20] sm:$0xff]
  %v30 = vld [vmem:[%s0 + $0x28] sm:$0xff]
  %v31 = vld [vmem:[%s0 + $0x30] sm:$0xff]
  %v32 = vld [vmem:[%s0 + $0x38] sm:$0xff]
  %v33 = vld [vmem:[%s1] sm:$0xff]
  %v34 = vld [vmem:[%s1 + $0x8] sm:$0xff]
  %v35 = vld [vmem:[%s2] sm:$0x1]
  %v37 = vlaneseq
  %v38 = vshrl.u32 %v37, 7
  %v39 = vsub.s32 0, %v38
  %v40 = vrot.slane %v35, %v39
  %vm42 = vcmask 130048
  %v44 = vsel %vm42, %v25, 0
  %v47 = vsel %vm42, %v26, 0
  %v50 = vsel %vm42, %v27, 0
  %v53 = vsel %vm42, %v28, 0
  %v56 = vsel %vm42, %v29, 0
  %v59 = vsel %vm42, %v30, 0
  %v62 = vsel %vm42, %v31, 0
  %v65 = vsel %vm42, %v32, 0
  %67 = vmatprep.subr.mxu0 0.0
  %68 = vmatpush1.msra.mxu0 %v33
  %69 = vmatprep.subr.mxu0 0.0
  %70 = vmatpush1.msra.mxu0 %v34
  %71 = vmatprep.subr.mxu0 0.0
  %72 = vmatpush1.msra.mxu0 0.0
  %73 = vmatprep.subr.mxu0 0.0
  %74 = vmatpush1.msra.mxu0 0.0
  %75 = vmatprep.subr.mxu0 0.0
  %76 = vmatpush1.msra.mxu0 0.0
  %77 = vmatprep.subr.mxu0 0.0
  %78 = vmatpush1.msra.mxu0 0.0
  %79 = vmatprep.subr.mxu0 0.0
  %80 = vmatpush1.msra.mxu0 0.0
  %81 = vmatprep.subr.mxu0 0.0
  %82 = vmatpush1.msra.mxu0 0.0
  %83 = vmatprep.subr.mxu0 0.0
  %84 = vmatpush1.msra.mxu0 0.0
  %85 = vmatprep.subr.mxu0 0.0
  %86 = vmatpush1.msra.mxu0 0.0
  %87 = vmatprep.subr.mxu0 0.0
  %88 = vmatpush1.msra.mxu0 0.0
  %89 = vmatprep.subr.mxu0 0.0
  %90 = vmatpush1.msra.mxu0 0.0
  %91 = vmatprep.subr.mxu0 0.0
  %92 = vmatpush1.msra.mxu0 0.0
  %93 = vmatprep.subr.mxu0 0.0
  %94 = vmatpush1.msra.mxu0 0.0
  %95 = vmatprep.subr.mxu0 0.0
  %96 = vmatpush1.msra.mxu0 0.0
  %97 = vmatprep.subr.mxu0 0.0
  %98 = vmatpush1.msra.mxu0 0.0
  %99 = vmatprep.subr.mxu0 0.0
  %100 = vmatpush1.msra.mxu0 0.0
  %101 = vmatprep.subr.mxu0 0.0
  %102 = vmatpush1.msra.mxu0 0.0
  %103 = vmatprep.subr.mxu0 0.0
  %104 = vmatpush1.msra.mxu0 0.0
  %105 = vmatprep.subr.mxu0 0.0
  %106 = vmatpush1.msra.mxu0 0.0
  %107 = vmatprep.subr.mxu0 0.0
  %108 = vmatpush1.msra.mxu0 0.0
  %109 = vmatprep.subr.mxu0 0.0
  %110 = vmatpush1.msra.mxu0 0.0
  %111 = vmatprep.subr.mxu0 0.0
  %112 = vmatpush1.msra.mxu0 0.0
  %113 = vmatprep.subr.mxu0 0.0
  %114 = vmatpush1.msra.mxu0 0.0
  %115 = vmatprep.subr.mxu0 0.0
  %116 = vmatpush1.msra.mxu0 0.0
  %117 = vmatprep.subr.mxu0 0.0
  %118 = vmatpush1.msra.mxu0 0.0
  %119 = vmatprep.subr.mxu0 0.0
  %120 = vmatpush1.msra.mxu0 0.0
  %121 = vmatprep.subr.mxu0 0.0
  %122 = vmatpush1.msra.mxu0 0.0
  %123 = vmatprep.subr.mxu0 0.0
  %124 = vmatpush1.msra.mxu0 0.0
  %125 = vmatprep.subr.mxu0 0.0
  %126 = vmatpush1.msra.mxu0 0.0
  %127 = vmatprep.subr.mxu0 0.0
  %128 = vmatpush1.msra.mxu0 0.0
  %129 = vmatprep.subr.mxu0 0.0
  %130 = vmatpush1.msra.mxu0 0.0
  %131 = vmatprep.mubr.f32.mxu0 0.0
  %132 = vmatmul.mubr.f32.gmra.mrb[0].mxu0 %v44
  %v133 = vpop.f32.mrb[0].mxu0
  %v134 = vadd.f32 %v40, %v133
  %v135 = vpop.f32.mrb[0].mxu0
  %136 = vmatprep.mubr.f32.mxu0 0.0
  %137 = vmatmul.mubr.f32.gmra.mrb[0].mxu0 %v47
  %v138 = vpop.f32.mrb[0].mxu0
  %v139 = vadd.f32 %v40, %v138
  %v140 = vpop.f32.mrb[0].mxu0
  %141 = vmatprep.mubr.f32.mxu0 0.0
  %142 = vmatmul.mubr.f32.gmra.mrb[0].mxu0 %v50
  %v143 = vpop.f32.mrb[0].mxu0
  %v144 = vadd.f32 %v40, %v143
  %v145 = vpop.f32.mrb[0].mxu0
  %146 = vmatprep.mubr.f32.mxu0 0.0
  %147 = vmatmul.mubr.f32.gmra.mrb[0].mxu0 %v53
  %v148 = vpop.f32.mrb[0].mxu0
  %v149 = vadd.f32 %v40, %v148
  %v150 = vpop.f32.mrb[0].mxu0
  %151 = vmatprep.mubr.f32.mxu0 0.0
  %152 = vmatmul.mubr.f32.gmra.mrb[0].mxu0 %v56
  %v153 = vpop.f32.mrb[0].mxu0
  %v154 = vadd.f32 %v40, %v153
  %v155 = vpop.f32.mrb[0].mxu0
  %156 = vmatprep.mubr.f32.mxu0 0.0
  %157 = vmatmul.mubr.f32.gmra.mrb[0].mxu0 %v59
  %v158 = vpop.f32.mrb[0].mxu0
  %v159 = vadd.f32 %v40, %v158
  %v160 = vpop.f32.mrb[0].mxu0
  %161 = vmatprep.mubr.f32.mxu0 0.0
  %162 = vmatmul.mubr.f32.gmra.mrb[0].mxu0 %v62
  %v163 = vpop.f32.mrb[0].mxu0
  %v164 = vadd.f32 %v40, %v163
  %v165 = vpop.f32.mrb[0].mxu0
  %166 = vmatprep.mubr.f32.mxu0 0.0
  %167 = vmatmul.mubr.f32.gmra.mrb[0].mxu0 %v65
  %v168 = vpop.f32.mrb[0].mxu0
  %v169 = vadd.f32 %v40, %v168
  %v170 = vpop.f32.mrb[0].mxu0
  %171 = vdwg.mxu0
  %172 = vst [vmem:[#allocation2] sm:$0xff] %v134
  %173 = vst [vmem:[#allocation2 + $0x8] sm:$0xff] %v139
  %174 = vst [vmem:[#allocation2 + $0x10] sm:$0xff] %v144
  %175 = vst [vmem:[#allocation2 + $0x18] sm:$0xff] %v149
  %176 = vst [vmem:[#allocation2 + $0x20] sm:$0xff] %v154
  %177 = vst [vmem:[#allocation2 + $0x28] sm:$0xff] %v159
  %178 = vst [vmem:[#allocation2 + $0x30] sm:$0xff] %v164
  %179 = vst [vmem:[#allocation2 + $0x38] sm:$0xff] %v169
  %v180 = vld [vmem:[%s3] sm:$0xff]
  %v181 = vld [vmem:[%s3 + $0x8] sm:$0xff]
  %v182 = vld [vmem:[%s3 + $0x10] sm:$0xff]
  %v183 = vld [vmem:[%s3 + $0x18] sm:$0xff]
  loop: start=0, step=1, limit=8
  $region26: #{lstm_encoder_forward.1} parent=0 // loop_pre_header
    _
  $region27: #{lstm_encoder_forward.1} parent=0 // loop_header
    %s185 = sphi 0, %s189
    %p186 = scmp.ge.s32.totalorder %s185, 8
    %v190 = vphi 0.0, %v295
    %v191 = vphi 0.0, %v289
  $region28: #{lstm_encoder_forward.1} parent=0 // loop_header_branch
    %188 = sbr.rel (%p186) target = $region32
  $region29: #{lstm_encoder_forward.1} parent=0 // loop_body
    %s192 = smul.u32 %s185, 8
    %s193 = scalar_lea.vmem [#allocation2], %s192
    %v194 = vld [vmem:[%s193] sm:$0xff]
    %196 = vrot.lane.b32.xlu0 %v190, 32
    %v197 = vpop.permute.xlu0 %196
    %vm198 = vcmask 261120
    %v199 = vsel %vm198, %v197, 0
    %201 = vmatprep.subr.mxu0 0.0
    %202 = vmatpush1.msra.mxu0 %v180
    %203 = vmatprep.subr.mxu0 0.0
    %204 = vmatpush1.msra.mxu0 %v181
    %205 = vmatprep.subr.mxu0 0.0
    %206 = vmatpush1.msra.mxu0 %v182
    %207 = vmatprep.subr.mxu0 0.0
    %208 = vmatpush1.msra.mxu0 %v183
    %209 = vmatprep.subr.mxu0 0.0
    %210 = vmatpush1.msra.mxu0 0.0
    %211 = vmatprep.subr.mxu0 0.0
    %212 = vmatpush1.msra.mxu0 0.0
    %213 = vmatprep.subr.mxu0 0.0
    %214 = vmatpush1.msra.mxu0 0.0
    %215 = vmatprep.subr.mxu0 0.0
    %216 = vmatpush1.msra.mxu0 0.0
    %217 = vmatprep.subr.mxu0 0.0
    %218 = vmatpush1.msra.mxu0 0.0
    %219 = vmatprep.subr.mxu0 0.0
    %220 = vmatpush1.msra.mxu0 0.0
    %221 = vmatprep.subr.mxu0 0.0
    %222 = vmatpush1.msra.mxu0 0.0
    %223 = vmatprep.subr.mxu0 0.0
    %224 = vmatpush1.msra.mxu0 0.0
    %225 = vmatprep.subr.mxu0 0.0
    %226 = vmatpush1.msra.mxu0 0.0
    %227 = vmatprep.subr.mxu0 0.0
    %228 = vmatpush1.msra.mxu0 0.0
    %229 = vmatprep.subr.mxu0 0.0
    %230 = vmatpush1.msra.mxu0 0.0
    %231 = vmatprep.subr.mxu0 0.0
    %232 = vmatpush1.msra.mxu0 0.0
    %233 = vmatprep.subr.mxu0 0.0
    %234 = vmatpush1.msra.mxu0 0.0
    %235 = vmatprep.subr.mxu0 0.0
    %236 = vmatpush1.msra.mxu0 0.0
    %237 = vmatprep.subr.mxu0 0.0
    %238 = vmatpush1.msra.mxu0 0.0
    %239 = vmatprep.subr.mxu0 0.0
    %240 = vmatpush1.msra.mxu0 0.0
    %241 = vmatprep.subr.mxu0 0.0
    %242 = vmatpush1.msra.mxu0 0.0
    %243 = vmatprep.subr.mxu0 0.0
    %244 = vmatpush1.msra.mxu0 0.0
    %245 = vmatprep.subr.mxu0 0.0
    %246 = vmatpush1.msra.mxu0 0.0
    %247 = vmatprep.subr.mxu0 0.0
    %248 = vmatpush1.msra.mxu0 0.0
    %249 = vmatprep.subr.mxu0 0.0
    %250 = vmatpush1.msra.mxu0 0.0
    %251 = vmatprep.subr.mxu0 0.0
    %252 = vmatpush1.msra.mxu0 0.0
    %253 = vmatprep.subr.mxu0 0.0
    %254 = vmatpush1.msra.mxu0 0.0
    %255 = vmatprep.subr.mxu0 0.0
    %256 = vmatpush1.msra.mxu0 0.0
    %257 = vmatprep.subr.mxu0 0.0
    %258 = vmatpush1.msra.mxu0 0.0
    %259 = vmatprep.subr.mxu0 0.0
    %260 = vmatpush1.msra.mxu0 0.0
    %261 = vmatprep.subr.mxu0 0.0
    %262 = vmatpush1.msra.mxu0 0.0
    %263 = vmatprep.subr.mxu0 0.0
    %264 = vmatpush1.msra.mxu0 0.0
    %265 = vmatprep.mubr.f32.mxu0 0.0
    %266 = vmatmul.mubr.f32.gmra.mrb[0].mxu0 %v199
    %v267 = vpop.f32.mrb[0].mxu0
    %v268 = vadd.f32 0.0, %v267
    %v269 = vpop.f32.mrb[0].mxu0
    %270 = vdwg.mxu0
    %v271 = vadd.f32 %v194, %v268
    %v272 = vxor.u32 %v271, 2147483648
    %v273 = vmul.f32 %v272, 1.442695
    %v274 = vpow.pop %v273
    %v275 = vadd.f32 %v274, 1.0
    %v276 = vrcp.pop %v275
    %v277 = vmul.f32 1.0, %v276
    %v278 = vtanh.pop %v271
    %v279 = vmul.f32 %v277, %v191
    %281 = vrot.lane.b32.xlu0 %v278, 64
    %v282 = vpop.permute.xlu0 %281
    %v284 = vmul.f32 %v277, %v282
    %286 = vrot.lane.b32.xlu0 %v284, 32
    %v287 = vpop.permute.xlu0 %286
    %v289 = vadd.f32 %v279, %v287
    %v290 = vtanh.pop %v289
    %292 = vrot.lane.b32.xlu0 %v290, 64
    %v293 = vpop.permute.xlu0 %292
    %v295 = vmul.f32 %v277, %v293
    %297 = vrot.lane.b32.xlu0 %v295, 32
    %v298 = vpop.permute.xlu0 %297
    %s300 = scalar_lea.vmem [#allocation3], %s192
    %301 = vst.msk [vmem:[%s300] sm:$0xff] %vm198, %v298
  $region30: #{lstm_encoder_forward.1} parent=0 // loop_footer
    %s189 = sadd.s32 1, %s185
  $region31: #{lstm_encoder_forward.1} parent=0 // loop_footer_branch
    %184 = sbr.rel target = $region27
  $region32: #{lstm_encoder_forward.1} parent=0 // loop_exit
    _
  %303 = vrot.lane.b32.xlu0 %v190, 32
  %v304 = vpop.permute.xlu0 %303
  %vm306 = vcmask 261120
  %307 = vst.msk [vmem:[%s6] sm:$0xff] %vm306, %v304
  %309 = vrot.lane.b32.xlu0 %v191, 96
  %v310 = vpop.permute.xlu0 %309
  %312 = vst.msk [vmem:[%s7] sm:$0xff] %vm306, %v310
  %v313 = vld [vmem:[#allocation3] sm:$0xff]
  %v314 = vld [vmem:[#allocation3 + $0x8] sm:$0xff]
  %v315 = vld [vmem:[#allocation3 + $0x10] sm:$0xff]
  %v316 = vld [vmem:[#allocation3 + $0x18] sm:$0xff]
  %v317 = vld [vmem:[#allocation3 + $0x20] sm:$0xff]
  %v318 = vld [vmem:[#allocation3 + $0x28] sm:$0xff]
  %v319 = vld [vmem:[#allocation3 + $0x30] sm:$0xff]
  %v320 = vld [vmem:[#allocation3 + $0x38] sm:$0xff]
  %v321 = vld [vmem:[%s4] sm:$0xff]
  %v322 = vld [vmem:[%s4 + $0x8] sm:$0xff]
  %v323 = vld [vmem:[%s4 + $0x10] sm:$0xff]
  %v324 = vld [vmem:[%s4 + $0x18] sm:$0xff]
  %v325 = vld [vmem:[%s5] sm:$0x1]
  %v327 = vlaneseq
  %v328 = vshrl.u32 %v327, 7
  %v329 = vsub.s32 0, %v328
  %v330 = vrot.slane %v325, %v329
  %v333 = vsel %vm306, %v313, 0
  %v336 = vsel %vm306, %v314, 0
  %v339 = vsel %vm306, %v315, 0
  %v342 = vsel %vm306, %v316, 0
  %v345 = vsel %vm306, %v317, 0
  %v348 = vsel %vm306, %v318, 0
  %v351 = vsel %vm306, %v319, 0
  %v354 = vsel %vm306, %v320, 0
  %356 = vmatprep.subr.mxu0 0.0
  %357 = vmatpush1.msra.mxu0 %v321
  %358 = vmatprep.subr.mxu0 0.0
  %359 = vmatpush1.msra.mxu0 %v322
  %360 = vmatprep.subr.mxu0 0.0
  %361 = vmatpush1.msra.mxu0 %v323
  %362 = vmatprep.subr.mxu0 0.0
  %363 = vmatpush1.msra.mxu0 %v324
  %364 = vmatprep.subr.mxu0 0.0
  %365 = vmatpush1.msra.mxu0 0.0
  %366 = vmatprep.subr.mxu0 0.0
  %367 = vmatpush1.msra.mxu0 0.0
  %368 = vmatprep.subr.mxu0 0.0
  %369 = vmatpush1.msra.mxu0 0.0
  %370 = vmatprep.subr.mxu0 0.0
  %371 = vmatpush1.msra.mxu0 0.0
  %372 = vmatprep.subr.mxu0 0.0
  %373 = vmatpush1.msra.mxu0 0.0
  %374 = vmatprep.subr.mxu0 0.0
  %375 = vmatpush1.msra.mxu0 0.0
  %376 = vmatprep.subr.mxu0 0.0
  %377 = vmatpush1.msra.mxu0 0.0
  %378 = vmatprep.subr.mxu0 0.0
  %379 = vmatpush1.msra.mxu0 0.0
  %380 = vmatprep.subr.mxu0 0.0
  %381 = vmatpush1.msra.mxu0 0.0
  %382 = vmatprep.subr.mxu0 0.0
  %383 = vmatpush1.msra.mxu0 0.0
  %384 = vmatprep.subr.mxu0 0.0
  %385 = vmatpush1.msra.mxu0 0.0
  %386 = vmatprep.subr.mxu0 0.0
  %387 = vmatpush1.msra.mxu0 0.0
  %388 = vmatprep.subr.mxu0 0.0
  %389 = vmatpush1.msra.mxu0 0.0
  %390 = vmatprep.subr.mxu0 0.0
  %391 = vmatpush1.msra.mxu0 0.0
  %392 = vmatprep.subr.mxu0 0.0
  %393 = vmatpush1.msra.mxu0 0.0
  %394 = vmatprep.subr.mxu0 0.0
  %395 = vmatpush1.msra.mxu0 0.0
  %396 = vmatprep.subr.mxu0 0.0
  %397 = vmatpush1.msra.mxu0 0.0
  %398 = vmatprep.subr.mxu0 0.0
  %399 = vmatpush1.msra.mxu0 0.0
  %400 = vmatprep.subr.mxu0 0.0
  %401 = vmatpush1.msra.mxu0 0.0
  %402 = vmatprep.subr.mxu0 0.0
  %403 = vmatpush1.msra.mxu0 0.0
  %404 = vmatprep.subr.mxu0 0.0
  %405 = vmatpush1.msra.mxu0 0.0
  %406 = vmatprep.subr.mxu0 0.0
  %407 = vmatpush1.msra.mxu0 0.0
  %408 = vmatprep.subr.mxu0 0.0
  %409 = vmatpush1.msra.mxu0 0.0
  %410 = vmatprep.subr.mxu0 0.0
  %411 = vmatpush1.msra.mxu0 0.0
  %412 = vmatprep.subr.mxu0 0.0
  %413 = vmatpush1.msra.mxu0 0.0
  %414 = vmatprep.subr.mxu0 0.0
  %415 = vmatpush1.msra.mxu0 0.0
  %416 = vmatprep.subr.mxu0 0.0
  %417 = vmatpush1.msra.mxu0 0.0
  %418 = vmatprep.subr.mxu0 0.0
  %419 = vmatpush1.msra.mxu0 0.0
  %420 = vmatprep.mubr.f32.mxu0 0.0
  %421 = vmatmul.mubr.f32.gmra.mrb[0].mxu0 %v333
  %v422 = vpop.f32.mrb[0].mxu0
  %v423 = vadd.f32 %v330, %v422
  %v424 = vpop.f32.mrb[0].mxu0
  %425 = vmatprep.mubr.f32.mxu0 0.0
  %426 = vmatmul.mubr.f32.gmra.mrb[0].mxu0 %v336
  %v427 = vpop.f32.mrb[0].mxu0
  %v428 = vadd.f32 %v330, %v427
  %v429 = vpop.f32.mrb[0].mxu0
  %430 = vmatprep.mubr.f32.mxu0 0.0
  %431 = vmatmul.mubr.f32.gmra.mrb[0].mxu0 %v339
  %v432 = vpop.f32.mrb[0].mxu0
  %v433 = vadd.f32 %v330, %v432
  %v434 = vpop.f32.mrb[0].mxu0
  %435 = vmatprep.mubr.f32.mxu0 0.0
  %436 = vmatmul.mubr.f32.gmra.mrb[0].mxu0 %v342
  %v437 = vpop.f32.mrb[0].mxu0
  %v438 = vadd.f32 %v330, %v437
  %v439 = vpop.f32.mrb[0].mxu0
  %440 = vmatprep.mubr.f32.mxu0 0.0
  %441 = vmatmul.mubr.f32.gmra.mrb[0].mxu0 %v345
  %v442 = vpop.f32.mrb[0].mxu0
  %v443 = vadd.f32 %v330, %v442
  %v444 = vpop.f32.mrb[0].mxu0
  %445 = vmatprep.mubr.f32.mxu0 0.0
  %446 = vmatmul.mubr.f32.gmra.mrb[0].mxu0 %v348
  %v447 = vpop.f32.mrb[0].mxu0
  %v448 = vadd.f32 %v330, %v447
  %v449 = vpop.f32.mrb[0].mxu0
  %450 = vmatprep.mubr.f32.mxu0 0.0
  %451 = vmatmul.mubr.f32.gmra.mrb[0].mxu0 %v351
  %v452 = vpop.f32.mrb[0].mxu0
  %v453 = vadd.f32 %v330, %v452
  %v454 = vpop.f32.mrb[0].mxu0
  %455 = vmatprep.mubr.f32.mxu0 0.0
  %456 = vmatmul.mubr.f32.gmra.mrb[0].mxu0 %v354
  %v457 = vpop.f32.mrb[0].mxu0
  %v458 = vadd.f32 %v330, %v457
  %v459 = vpop.f32.mrb[0].mxu0
  %460 = vdwg.mxu0
  %461 = vst [vmem:[#allocation2] sm:$0xff] %v423
  %462 = vst [vmem:[#allocation2 + $0x8] sm:$0xff] %v428
  %463 = vst [vmem:[#allocation2 + $0x10] sm:$0xff] %v433
  %464 = vst [vmem:[#allocation2 + $0x18] sm:$0xff] %v438
  %465 = vst [vmem:[#allocation2 + $0x20] sm:$0xff] %v443
  %466 = vst [vmem:[#allocation2 + $0x28] sm:$0xff] %v448
  %467 = vst [vmem:[#allocation2 + $0x30] sm:$0xff] %v453
  %468 = vst [vmem:[#allocation2 + $0x38] sm:$0xff] %v458
  %s469 = scalar_lea.vmem %s3, 32
  %v470 = vld [vmem:[%s469] sm:$0xff]
  %v471 = vld [vmem:[%s469 + $0x8] sm:$0xff]
  %v472 = vld [vmem:[%s469 + $0x10] sm:$0xff]
  %v473 = vld [vmem:[%s469 + $0x18] sm:$0xff]
  loop: start=0, step=1, limit=8
  $region33: #{lstm_encoder_forward.1} parent=0 // loop_pre_header
    _
  $region34: #{lstm_encoder_forward.1} parent=0 // loop_header
    %s475 = sphi 0, %s479
    %p476 = scmp.ge.s32.totalorder %s475, 8
    %v480 = vphi 0.0, %v584
    %v481 = vphi 0.0, %v578
  $region35: #{lstm_encoder_forward.1} parent=0 // loop_header_branch
    %478 = sbr.rel (%p476) target = $region39
  $region36: #{lstm_encoder_forward.1} parent=0 // loop_body
    %s482 = smul.u32 %s475, 8
    %s483 = scalar_lea.vmem [#allocation2], %s482
    %v484 = vld [vmem:[%s483] sm:$0xff]
    %486 = vrot.lane.b32.xlu0 %v480, 32
    %v487 = vpop.permute.xlu0 %486
    %v488 = vsel %vm306, %v487, 0
    %490 = vmatprep.subr.mxu0 0.0
    %491 = vmatpush1.msra.mxu0 %v470
    %492 = vmatprep.subr.mxu0 0.0
    %493 = vmatpush1.msra.mxu0 %v471
    %494 = vmatprep.subr.mxu0 0.0
    %495 = vmatpush1.msra.mxu0 %v472
    %496 = vmatprep.subr.mxu0 0.0
    %497 = vmatpush1.msra.mxu0 %v473
    %498 = vmatprep.subr.mxu0 0.0
    %499 = vmatpush1.msra.mxu0 0.0
    %500 = vmatprep.subr.mxu0 0.0
    %501 = vmatpush1.msra.mxu0 0.0
    %502 = vmatprep.subr.mxu0 0.0
    %503 = vmatpush1.msra.mxu0 0.0
    %504 = vmatprep.subr.mxu0 0.0
    %505 = vmatpush1.msra.mxu0 0.0
    %506 = vmatprep.subr.mxu0 0.0
    %507 = vmatpush1.msra.mxu0 0.0
    %508 = vmatprep.subr.mxu0 0.0
    %509 = vmatpush1.msra.mxu0 0.0
    %510 = vmatprep.subr.mxu0 0.0
    %511 = vmatpush1.msra.mxu0 0.0
    %512 = vmatprep.subr.mxu0 0.0
    %513 = vmatpush1.msra.mxu0 0.0
    %514 = vmatprep.subr.mxu0 0.0
    %515 = vmatpush1.msra.mxu0 0.0
    %516 = vmatprep.subr.mxu0 0.0
    %517 = vmatpush1.msra.mxu0 0.0
    %518 = vmatprep.subr.mxu0 0.0
    %519 = vmatpush1.msra.mxu0 0.0
    %520 = vmatprep.subr.mxu0 0.0
    %521 = vmatpush1.msra.mxu0 0.0
    %522 = vmatprep.subr.mxu0 0.0
    %523 = vmatpush1.msra.mxu0 0.0
    %524 = vmatprep.subr.mxu0 0.0
    %525 = vmatpush1.msra.mxu0 0.0
    %526 = vmatprep.subr.mxu0 0.0
    %527 = vmatpush1.msra.mxu0 0.0
    %528 = vmatprep.subr.mxu0 0.0
    %529 = vmatpush1.msra.mxu0 0.0
    %530 = vmatprep.subr.mxu0 0.0
    %531 = vmatpush1.msra.mxu0 0.0
    %532 = vmatprep.subr.mxu0 0.0
    %533 = vmatpush1.msra.mxu0 0.0
    %534 = vmatprep.subr.mxu0 0.0
    %535 = vmatpush1.msra.mxu0 0.0
    %536 = vmatprep.subr.mxu0 0.0
    %537 = vmatpush1.msra.mxu0 0.0
    %538 = vmatprep.subr.mxu0 0.0
    %539 = vmatpush1.msra.mxu0 0.0
    %540 = vmatprep.subr.mxu0 0.0
    %541 = vmatpush1.msra.mxu0 0.0
    %542 = vmatprep.subr.mxu0 0.0
    %543 = vmatpush1.msra.mxu0 0.0
    %544 = vmatprep.subr.mxu0 0.0
    %545 = vmatpush1.msra.mxu0 0.0
    %546 = vmatprep.subr.mxu0 0.0
    %547 = vmatpush1.msra.mxu0 0.0
    %548 = vmatprep.subr.mxu0 0.0
    %549 = vmatpush1.msra.mxu0 0.0
    %550 = vmatprep.subr.mxu0 0.0
    %551 = vmatpush1.msra.mxu0 0.0
    %552 = vmatprep.subr.mxu0 0.0
    %553 = vmatpush1.msra.mxu0 0.0
    %554 = vmatprep.mubr.f32.mxu0 0.0
    %555 = vmatmul.mubr.f32.gmra.mrb[0].mxu0 %v488
    %v556 = vpop.f32.mrb[0].mxu0
    %v557 = vadd.f32 0.0, %v556
    %v558 = vpop.f32.mrb[0].mxu0
    %559 = vdwg.mxu0
    %v560 = vadd.f32 %v484, %v557
    %v561 = vxor.u32 %v560, 2147483648
    %v562 = vmul.f32 %v561, 1.442695
    %v563 = vpow.pop %v562
    %v564 = vadd.f32 %v563, 1.0
    %v565 = vrcp.pop %v564
    %v566 = vmul.f32 1.0, %v565
    %v567 = vtanh.pop %v560
    %v568 = vmul.f32 %v566, %v481
    %570 = vrot.lane.b32.xlu0 %v567, 64
    %v571 = vpop.permute.xlu0 %570
    %v573 = vmul.f32 %v566, %v571
    %575 = vrot.lane.b32.xlu0 %v573, 32
    %v576 = vpop.permute.xlu0 %575
    %v578 = vadd.f32 %v568, %v576
    %v579 = vtanh.pop %v578
    %581 = vrot.lane.b32.xlu0 %v579, 64
    %v582 = vpop.permute.xlu0 %581
    %v584 = vmul.f32 %v566, %v582
  $region37: #{lstm_encoder_forward.1} parent=0 // loop_footer
    %s479 = sadd.s32 1, %s475
  $region38: #{lstm_encoder_forward.1} parent=0 // loop_footer_branch
    %474 = sbr.rel target = $region34
  $region39: #{lstm_encoder_forward.1} parent=0 // loop_exit
    _
  %586 = vrot.lane.b32.xlu0 %v480, 32
  %v587 = vpop.permute.xlu0 %586
  %s589 = scalar_lea.vmem %s6, 8
  %590 = vst.msk [vmem:[%s589] sm:$0xff] %vm306, %v587
  %592 = vrot.lane.b32.xlu0 %v481, 96
  %v593 = vpop.permute.xlu0 %592
  %s595 = scalar_lea.vmem %s7, 8
  %596 = vst.msk [vmem:[%s595] sm:$0xff] %vm306, %v593
  // Predicated region
  $region40: #{lstm_encoder_forward.1} parent=0 // pred_check
    _
  $region41: #{lstm_encoder_forward.1} parent=0 // pred_check_branch
    %598 = sbr.rel (0) target = $region43
  $region42: #{lstm_encoder_forward.1} parent=0 // pred_region
    _
  $region43: #{lstm_encoder_forward.1} parent=0 // pred_fallthru
    _
  // Predicated region
  $region44: #{lstm_encoder_forward.1} parent=0 // pred_check
    _
  $region45: #{lstm_encoder_forward.1} parent=0 // pred_check_branch
    %600 = sbr.rel (0) target = $region47
  $region46: #{lstm_encoder_forward.1} parent=0 // pred_region
    _
  $region47: #{lstm_encoder_forward.1} parent=0 // pred_fallthru
    _
  // Predicated region
  $region48: #{lstm_encoder_forward.1} parent=0 // pred_check
    _
  $region49: #{lstm_encoder_forward.1} parent=0 // pred_check_branch
    %602 = sbr.rel (0) target = $region51
  $region50: #{lstm_encoder_forward.1} parent=0 // pred_region
    _
  $region51: #{lstm_encoder_forward.1} parent=0 // pred_fallthru
    _
  // Predicated region
  $region52: #{lstm_encoder_forward.1} parent=0 // pred_check
    _
  $region53: #{lstm_encoder_forward.1} parent=0 // pred_check_branch
    %604 = sbr.rel (0) target = $region55
  $region54: #{lstm_encoder_forward.1} parent=0 // pred_region
    _
  $region55: #{lstm_encoder_forward.1} parent=0 // pred_fallthru
    _

</llo_original>
